<compile_context>
chip_gen: v6e
topology: v6e:2x2x1
jax: 0.10.0
libtpu: 0.0.40
codegen_flags: <defaults>
</compile_context>

<pallas_src>
import jax
import jax.numpy as jnp
from jax.experimental import pallas as pl
from jax.experimental.pallas import tpu as pltpu


def attention_basic_kernel(x_ref, wqkv_ref, bqkv_ref, maskT_ref, o_ref):
    # x_ref:    (1, 1, S)  one batch row
    # wqkv_ref: (S, 3S)    [Wq.T | Wk.T | Wv.T]   (resident across grid)
    # bqkv_ref: (1, 3S)    [bq | bk | bv]         (resident across grid)
    # maskT_ref:(S, S)     triu(ones) == transposed causal keep-mask (resident)
    # o_ref:    (1, 1, S)
    f32 = jnp.float32
    S = maskT_ref.shape[0]

    x = x_ref[0]                                                   # (1, S)

    # Fused QKV projection: one MXU matmul + bias.
    qkv = jnp.dot(x, wqkv_ref[...], preferred_element_type=f32) + bqkv_ref[...]
    q = qkv[:, :S]                                                 # (1, S)
    k = qkv[:, S:2 * S]                                            # (1, S)
    v = qkv[:, 2 * S:]                                             # (1, S)

    # Transposed score matrix: scoresT[0, j, i] = k[j] * q[i]  (== scores.T).
    scoresT = k[:, :, None] * q[:, None, :]                        # (1, S, S)

    # Causal mask (transposed => upper-triangular keep), filled with -1e9.
    keepT = maskT_ref[...] != 0.0                                  # (S, S)
    scoresT = jnp.where(keepT[None, :, :], scoresT, f32(-1.0e9))

    # Softmax over the key axis (axis=1 here) with deferred normalization.
    m = jnp.max(scoresT, axis=1, keepdims=True)                    # (1, 1, S)
    e = jnp.exp(scoresT - m)                                       # (1, S, S)
    den = jnp.sum(e, axis=1)                                       # (1, S)

    # Weighted sum over keys on the MXU: num[0, i] = sum_j v[j] * e[j, i].
    num = jnp.dot(v, e[0], preferred_element_type=f32)             # (1, S)

    # approx=True would move this to the EUP but is only ~bf16 accurate;
    # keep exact reciprocal to hold the 1e-4 tolerance. Size is only (1, S).
    out = num * pl.reciprocal(den, approx=False)                   # (1, S)
    o_ref[...] = out[None, :, :].astype(o_ref.dtype)


def attention_basic(x, wq, bq, wk, bk, wv, bv):
    """x: (B, S). w*: (S, S) torch-layout (out, in). b*: (S,)."""
    B, S = x.shape
    f32 = jnp.float32

    # Fuse the three projections: x @ [Wq.T | Wk.T | Wv.T] + [bq | bk | bv].
    wqkv = jnp.concatenate([wq.T, wk.T, wv.T], axis=1)             # (S, 3S)
    bqkv = jnp.concatenate([bq, bk, bv]).reshape(1, 3 * S)         # (1, 3S)

    # Transposed keep-mask: keepT[j, i] = (j <= i)  -> upper triangular.
    maskT = jnp.triu(jnp.ones((S, S), f32))                        # (S, S)

    # Batch as a leading dim so (1, S) blocks equal the full last-two dims.
    x3 = x.reshape(B, 1, S)

    out3 = pl.pallas_call(
        attention_basic_kernel,
        out_shape=jax.ShapeDtypeStruct((B, 1, S), x.dtype),
        grid=(B,),
        in_specs=[
            pl.BlockSpec((1, 1, S), lambda b: (b, 0, 0)),          # x row b
            pl.BlockSpec((S, 3 * S), lambda b: (0, 0)),            # fused weights
            pl.BlockSpec((1, 3 * S), lambda b: (0, 0)),            # fused bias
            pl.BlockSpec((S, S), lambda b: (0, 0)),                # causal mask
        ],
        out_specs=pl.BlockSpec((1, 1, S), lambda b: (b, 0, 0)),
        compiler_params=pltpu.CompilerParams(
            dimension_semantics=("parallel",)),                    # v7x: 2 TCs
    )(x3, wqkv, bqkv, maskT)
    return out3.reshape(B, S)


def _reference(x, wq, bq, wk, bk, wv, bv):
    # Plain-JAX replica of the PyTorch forward (mask=True) for verification.
    q = x @ wq.T + bq
    k = x @ wk.T + bk
    v = x @ wv.T + bv
    scores = q[:, :, None] * k[:, None, :]
    S = x.shape[1]
    tril = jnp.tril(jnp.ones((S, S), jnp.float32))
    scores = jnp.where(tril[None] == 0, -1.0e9, scores)
    attn = jax.nn.softmax(scores, axis=-1)
    return jnp.sum(attn * v[:, None, :], axis=-1)


if __name__ == "__main__":
    B, S = 4, 128                      # small shapes: batch=4, seq_len=128
    key = jax.random.PRNGKey(0)
    kx, kwq, kbq, kwk, kbk, kwv, kbv = jax.random.split(key, 7)

    # Deterministic init, matching nn.Linear's uniform(-1/sqrt(in), 1/sqrt(in)).
    bound = 1.0 / jnp.sqrt(jnp.float32(S))
    x  = jax.random.normal(kx, (B, S), jnp.float32)
    wq = jax.random.uniform(kwq, (S, S), jnp.float32, -bound, bound)
    bq = jax.random.uniform(kbq, (S,),   jnp.float32, -bound, bound)
    wk = jax.random.uniform(kwk, (S, S), jnp.float32, -bound, bound)
    bk = jax.random.uniform(kbk, (S,),   jnp.float32, -bound, bound)
    wv = jax.random.uniform(kwv, (S, S), jnp.float32, -bound, bound)
    bv = jax.random.uniform(kbv, (S,),   jnp.float32, -bound, bound)

    out = attention_basic(x, wq, bq, wk, bk, wv, bv)
    out = jax.block_until_ready(out)

    ref = _reference(x, wq, bq, wk, bk, wv, bv)
    assert out.shape == (B, S)
    assert jnp.allclose(out, ref, atol=1e-4, rtol=1e-4), "mismatch vs reference"
    print("KERNEL_OK")
</pallas_src>

<mosaic_0001>
module attributes {stable_mosaic.version = 11 : i64} {
  func.func @attention_basic_kernel(%arg0: i32, %arg1: memref<1x1x128xf32, #tpu.memory_space<vmem>>, %arg2: memref<128x384xf32, #tpu.memory_space<vmem>>, %arg3: memref<1x384xf32, #tpu.memory_space<vmem>>, %arg4: memref<128x128xf32, #tpu.memory_space<vmem>>, %arg5: memref<1x1x128xf32, #tpu.memory_space<vmem>>) attributes {dimension_semantics = [#tpu.dimension_semantics<parallel>], iteration_bounds = array<i64: 4>, scalar_prefetch = 0 : i64, scratch_operands = 0 : i64, tpu.core_type = #tpu.core_type<tc>, window_params = [{transform_indices = @transform_0, window_bounds = array<i64: 1, 1, 128>}, {pipeline_mode = #tpu.pipeline_mode<synchronous>, transform_indices = @transform_1, window_bounds = array<i64: 128, 384>}, {pipeline_mode = #tpu.pipeline_mode<synchronous>, transform_indices = @transform_2, window_bounds = array<i64: 1, 384>}, {pipeline_mode = #tpu.pipeline_mode<synchronous>, transform_indices = @transform_3, window_bounds = array<i64: 128, 128>}, {transform_indices = @transform_4, window_bounds = array<i64: 1, 1, 128>}]} {
    %c0 = arith.constant 0 : index
    %c0_0 = arith.constant 0 : index
    %c0_1 = arith.constant 0 : index
    %0 = vector.load %arg1[%c0, %c0_0, %c0_1] : memref<1x1x128xf32, #tpu.memory_space<vmem>>, vector<1x1x128xf32>
    %1 = vector.shape_cast %0 : vector<1x1x128xf32> to vector<1x128xf32>
    %c0_2 = arith.constant 0 : index
    %c0_3 = arith.constant 0 : index
    %2 = vector.load %arg2[%c0_2, %c0_3] : memref<128x384xf32, #tpu.memory_space<vmem>>, vector<128x384xf32>
    %cst = arith.constant dense<0.000000e+00> : vector<1x384xf32>
    %3 = tpu.matmul %1, %2, %cst {dimension_numbers = #tpu.dot_dimension_numbers<[1], [0], [0], [1], [0, 0, 1, 1], [], []>} : vector<1x128xf32>, vector<128x384xf32>, vector<1x384xf32> -> vector<1x384xf32>
    %c0_4 = arith.constant 0 : index
    %c0_5 = arith.constant 0 : index
    %4 = vector.load %arg3[%c0_4, %c0_5] : memref<1x384xf32, #tpu.memory_space<vmem>>, vector<1x384xf32>
    %5 = arith.addf %3, %4 : vector<1x384xf32>
    %6 = vector.extract_strided_slice %5 {offsets = [0, 0], sizes = [1, 128], strides = [1, 1]} : vector<1x384xf32> to vector<1x128xf32>
    %7 = vector.extract_strided_slice %5 {offsets = [0, 128], sizes = [1, 128], strides = [1, 1]} : vector<1x384xf32> to vector<1x128xf32>
    %8 = vector.extract_strided_slice %5 {offsets = [0, 256], sizes = [1, 128], strides = [1, 1]} : vector<1x384xf32> to vector<1x128xf32>
    %9 = vector.shape_cast %7 : vector<1x128xf32> to vector<1x128x1xf32>
    %10 = vector.shape_cast %6 : vector<1x128xf32> to vector<1x1x128xf32>
    %11 = vector.broadcast %9 : vector<1x128x1xf32> to vector<1x128x128xf32>
    %12 = vector.broadcast %10 : vector<1x1x128xf32> to vector<1x128x128xf32>
    %13 = arith.mulf %11, %12 : vector<1x128x128xf32>
    %c0_6 = arith.constant 0 : index
    %c0_7 = arith.constant 0 : index
    %14 = vector.load %arg4[%c0_6, %c0_7] : memref<128x128xf32, #tpu.memory_space<vmem>>, vector<128x128xf32>
    %cst_8 = arith.constant 0.000000e+00 : f32
    %15 = vector.broadcast %cst_8 : f32 to vector<128x128xf32>
    %16 = arith.cmpf one, %14, %15 : vector<128x128xf32>
    %17 = vector.shape_cast %16 : vector<128x128xi1> to vector<1x128x128xi1>
    %cst_9 = arith.constant -1.000000e+09 : f32
    %18 = vector.broadcast %cst_9 : f32 to vector<1x128x128xf32>
    %19 = arith.select %17, %13, %18 : vector<1x128x128xi1>, vector<1x128x128xf32>
    %cst_10 = arith.constant dense<0xFF800000> : vector<1x128xf32>
    %20 = vector.multi_reduction <maximumf>, %19, %cst_10 [1] : vector<1x128x128xf32> to vector<1x128xf32>
    %21 = vector.shape_cast %20 : vector<1x128xf32> to vector<1x1x128xf32>
    %22 = vector.broadcast %21 : vector<1x1x128xf32> to vector<1x128x128xf32>
    %23 = arith.subf %19, %22 : vector<1x128x128xf32>
    %24 = math.exp %23 : vector<1x128x128xf32>
    %cst_11 = arith.constant dense<0.000000e+00> : vector<1x128xf32>
    %25 = vector.multi_reduction <add>, %24, %cst_11 [1] : vector<1x128x128xf32> to vector<1x128xf32>
    %26 = vector.shape_cast %24 : vector<1x128x128xf32> to vector<128x128xf32>
    %cst_12 = arith.constant dense<0.000000e+00> : vector<1x128xf32>
    %27 = tpu.matmul %8, %26, %cst_12 {dimension_numbers = #tpu.dot_dimension_numbers<[1], [0], [0], [1], [0, 0, 1, 1], [], []>} : vector<1x128xf32>, vector<128x128xf32>, vector<1x128xf32> -> vector<1x128xf32>
    %28 = tpu.reciprocal %25 : vector<1x128xf32> -> vector<1x128xf32>
    %29 = arith.mulf %27, %28 : vector<1x128xf32>
    %30 = vector.shape_cast %29 : vector<1x128xf32> to vector<1x1x128xf32>
    %c0_13 = arith.constant 0 : index
    %c0_14 = arith.constant 0 : index
    %c0_15 = arith.constant 0 : index
    %31 = vector.load %arg5[%c0_13, %c0_14, %c0_15] : memref<1x1x128xf32, #tpu.memory_space<vmem>>, vector<1x1x128xf32>
    tpu.vector_store %arg5[%c0_13, %c0_14, %c0_15], %30 {strides = array<i32>} : memref<1x1x128xf32, #tpu.memory_space<vmem>>, vector<1x1x128xf32>,
    return
  }
  func.func @transform_0(%arg0: i32) -> (i32, i32, i32) {
    %c0_i32 = arith.constant 0 : i32
    %c0_i32_0 = arith.constant 0 : i32
    %c0_i32_1 = arith.constant 0 : i32
    return %arg0, %c0_i32, %c0_i32_0 : i32, i32, i32
  }
  func.func @transform_1(%arg0: i32) -> (i32, i32) {
    %c0_i32 = arith.constant 0 : i32
    %c0_i32_0 = arith.constant 0 : i32
    %c0_i32_1 = arith.constant 0 : i32
    return %c0_i32, %c0_i32_0 : i32, i32
  }
  func.func @transform_2(%arg0: i32) -> (i32, i32) {
    %c0_i32 = arith.constant 0 : i32
    %c0_i32_0 = arith.constant 0 : i32
    %c0_i32_1 = arith.constant 0 : i32
    return %c0_i32, %c0_i32_0 : i32, i32
  }
  func.func @transform_3(%arg0: i32) -> (i32, i32) {
    %c0_i32 = arith.constant 0 : i32
    %c0_i32_0 = arith.constant 0 : i32
    %c0_i32_1 = arith.constant 0 : i32
    return %c0_i32, %c0_i32_0 : i32, i32
  }
  func.func @transform_4(%arg0: i32) -> (i32, i32, i32) {
    %c0_i32 = arith.constant 0 : i32
    %c0_i32_0 = arith.constant 0 : i32
    %c0_i32_1 = arith.constant 0 : i32
    return %arg0, %c0_i32, %c0_i32_0 : i32, i32, i32
  }
}

</mosaic_0001>

<llo_original>
// kernel: tpu_custom_call.1
$region0: #{tpu_custom_call.1}
  #allocation0 [shape = 'u32[]', space=smem, size = 0x4, offset = 0x4, fixed_abs, tag = 'smem constant byte address 0x4 - core index']
  #allocation1 [shape = 'u32[144,128]{1,0:T(1,128)}', space=vmem, size = 0x12000, scoped, tag = 'internal scratch']
  %s0 = inlined_call_operand.hbm [shape: f32[4,1,128], index: 0, kind: input, shape index: {}]
  %s1 = inlined_call_operand.hbm [shape: f32[128,384], index: 1, kind: input, shape index: {}]
  %s2 = inlined_call_operand.vmem [shape: f32[1,384], index: 2, kind: input, shape index: {}]
  %s3 = inlined_call_operand.hbm [shape: f32[128,128], index: 3, kind: input, shape index: {}]
  %s4 = inlined_call_operand.hbm [shape: f32[4,1,128], index: 4, kind: output, shape index: {}]
  %s5 = sld [smem:[#allocation0]]
  $region61: #{tpu_custom_call.1} parent=0
    _
  %s7 = ssub.s32 1, %s5
  %s8 = scalar_select 0, %s7, %s5
  $region1: #{tpu_custom_call.1} parent=0
    #allocation2 [shape = 'u8[1024]{0}', space=vmem, size = 0x400, scoped, tag = 'input window, operand 0']
    #allocation3 [shape = 's32[2]{0}', space=sflag, size = 0x8, scoped, tag = 'scoped memory for tpu_custom_call.1']
    #allocation4 [shape = 's32[2]{0}', space=sflag, size = 0x8, scoped, tag = 'scoped memory for tpu_custom_call.1']
    #allocation5 [shape = 'u8[196608]{0}', space=vmem, size = 0x30000, scoped, tag = 'input window, operand 1, single buffered']
    #allocation6 [shape = 's32[1]{0}', space=sflag, size = 0x4, scoped, tag = 'scoped memory for tpu_custom_call.1']
    #allocation7 [shape = 'u8[65536]{0}', space=vmem, size = 0x10000, scoped, tag = 'input window, operand 3, single buffered']
    #allocation8 [shape = 'u8[1024]{0}', space=vmem, size = 0x400, scoped, tag = 'output window, operand 0']
    %9 = vsyncpa [#allocation3], 0
    %s10 = scalar_lea.sflag [#allocation3], 1
    %11 = vsyncpa %s10, 0
    %12 = vsyncpa [#allocation6], 0
    %13 = vsyncpa [#allocation4], 0
    %s14 = scalar_lea.sflag [#allocation4], 1
    %15 = vsyncpa %s14, 0
    loop: start=0, step=1, limit=6
    $region2: #{tpu_custom_call.1} parent=1 // loop_pre_header
      _
    $region3: #{tpu_custom_call.1} parent=1 // loop_header
      %s17 = sphi 0, %s21
      %p18 = scmp.ge.s32.totalorder %s17, 6
      %s27 = sphi 0, %s29
      %s30 = sphi 0, %s27
      %s31 = sphi 0, %s30
      %s47 = sphi 0, %s31
      %s51 = sphi 0, %s51
      %s53 = sphi 0, %s51
      %s54 = sphi 0, %s53
      %s68 = sphi 0, %s54
      %s72 = sphi 0, %s72
      %s74 = sphi 0, %s72
      %s75 = sphi 0, %s74
      %s89 = sphi 0, %s75
      %s93 = sphi 0, %s93
      %s95 = sphi 0, %s93
      %s96 = sphi 0, %s95
      %s110 = sphi 0, %s96
      %s116 = sphi 0, %s118
      %s119 = sphi 0, %s116
      %s120 = sphi 0, %s119
      %s136 = sphi 0, %s120
    $region4: #{tpu_custom_call.1} parent=1 // loop_header_branch
      %20 = sbr.rel (%p18) target = $region8
    $region5: #{tpu_custom_call.1} parent=1 // loop_body
      %s22 = ssub.s32 %s17, 1
      %s23 = ssub.s32 %s17, 2
      %s24 = sadd.s32 %s17, 1
      %s25 = ssub.s32 %s17, %s24
      %p26 = scmp.eq.s32.totalorder %s25, 0
      %s28 = sadd.s32 %s27, 1
      %s29 = scalar_select %p26, %s27, %s28
      %p32 = pneg %p26
      %p33 = scmp.eq.s32.totalorder %s17, 3
      %p34 = por %p32, %p33
      %p35 = scmp.ne.s32.totalorder %s27, %s30
      %p36 = scmp.eq.s32.totalorder %s17, 0
      %p37 = por %p35, %p36
      %p38 = scmp.ne.s32.totalorder %s27, %s30
      %p39 = scmp.eq.s32.totalorder %s22, 3
      %p40 = por %p38, %p39
      %p41 = scmp.ne.s32.totalorder %s30, %s31
      %p42 = scmp.eq.s32.totalorder %s22, 0
      %p43 = por %p41, %p42
      %p44 = scmp.ne.s32.totalorder %s30, %s31
      %p45 = scmp.eq.s32.totalorder %s23, 3
      %p46 = por %p44, %p45
      %p48 = scmp.ne.s32.totalorder %s31, %s47
      %p49 = scmp.eq.s32.totalorder %s23, 0
      %p50 = por %p48, %p49
      %s52 = sadd.s32 %s51, 1
      %p55 = scmp.eq.s32.totalorder %s17, 3
      %p56 = scmp.ne.s32.totalorder %s51, %s53
      %p57 = scmp.eq.s32.totalorder %s17, 0
      %p58 = por %p56, %p57
      %p59 = scmp.ne.s32.totalorder %s51, %s53
      %p60 = scmp.eq.s32.totalorder %s22, 3
      %p61 = por %p59, %p60
      %p62 = scmp.ne.s32.totalorder %s53, %s54
      %p63 = scmp.eq.s32.totalorder %s22, 0
      %p64 = por %p62, %p63
      %p65 = scmp.ne.s32.totalorder %s53, %s54
      %p66 = scmp.eq.s32.totalorder %s23, 3
      %p67 = por %p65, %p66
      %p69 = scmp.ne.s32.totalorder %s54, %s68
      %p70 = scmp.eq.s32.totalorder %s23, 0
      %p71 = por %p69, %p70
      %s73 = sadd.s32 %s72, 1
      %p76 = scmp.eq.s32.totalorder %s17, 3
      %p77 = scmp.ne.s32.totalorder %s72, %s74
      %p78 = scmp.eq.s32.totalorder %s17, 0
      %p79 = por %p77, %p78
      %p80 = scmp.ne.s32.totalorder %s72, %s74
      %p81 = scmp.eq.s32.totalorder %s22, 3
      %p82 = por %p80, %p81
      %p83 = scmp.ne.s32.totalorder %s74, %s75
      %p84 = scmp.eq.s32.totalorder %s22, 0
      %p85 = por %p83, %p84
      %p86 = scmp.ne.s32.totalorder %s74, %s75
      %p87 = scmp.eq.s32.totalorder %s23, 3
      %p88 = por %p86, %p87
      %p90 = scmp.ne.s32.totalorder %s75, %s89
      %p91 = scmp.eq.s32.totalorder %s23, 0
      %p92 = por %p90, %p91
      %s94 = sadd.s32 %s93, 1
      %p97 = scmp.eq.s32.totalorder %s17, 3
      %p98 = scmp.ne.s32.totalorder %s93, %s95
      %p99 = scmp.eq.s32.totalorder %s17, 0
      %p100 = por %p98, %p99
      %p101 = scmp.ne.s32.totalorder %s93, %s95
      %p102 = scmp.eq.s32.totalorder %s22, 3
      %p103 = por %p101, %p102
      %p104 = scmp.ne.s32.totalorder %s95, %s96
      %p105 = scmp.eq.s32.totalorder %s22, 0
      %p106 = por %p104, %p105
      %p107 = scmp.ne.s32.totalorder %s95, %s96
      %p108 = scmp.eq.s32.totalorder %s23, 3
      %p109 = por %p107, %p108
      %p111 = scmp.ne.s32.totalorder %s96, %s110
      %p112 = scmp.eq.s32.totalorder %s23, 0
      %p113 = por %p111, %p112
      %s114 = ssub.s32 %s17, %s24
      %p115 = scmp.eq.s32.totalorder %s114, 0
      %s117 = sadd.s32 %s116, 1
      %s118 = scalar_select %p115, %s116, %s117
      %p121 = pneg %p115
      %p122 = scmp.eq.s32.totalorder %s17, 3
      %p123 = por %p121, %p122
      %p124 = scmp.ne.s32.totalorder %s116, %s119
      %p125 = scmp.eq.s32.totalorder %s17, 0
      %p126 = por %p124, %p125
      %p127 = scmp.ne.s32.totalorder %s116, %s119
      %p128 = scmp.eq.s32.totalorder %s22, 3
      %p129 = por %p127, %p128
      %p130 = scmp.ne.s32.totalorder %s119, %s120
      %p131 = scmp.eq.s32.totalorder %s22, 0
      %p132 = por %p130, %p131
      %p133 = scmp.ne.s32.totalorder %s119, %s120
      %p134 = scmp.eq.s32.totalorder %s23, 3
      %p135 = por %p133, %p134
      %p137 = scmp.ne.s32.totalorder %s120, %s136
      %p138 = scmp.eq.s32.totalorder %s23, 0
      %p139 = por %p137, %p138
      %p140 = scmp.le.s32.totalorder 1, %s17
      %p141 = scmp.lt.s32.totalorder %s17, 5
      %p142 = pnand %p140, %p141
      %p143 = pneg %p142
      // Predicated region
      $region9: #{tpu_custom_call.1} parent=5 // pred_check
        _
      $region10: #{tpu_custom_call.1} parent=5 // pred_check_branch
        %145 = sbr.rel (%p142) target = $region12
      $region11: #{tpu_custom_call.1} parent=5 // pred_region
        %s146 = ssub.s32 %s17, 1
        // Predicated region
        $region13: #{tpu_custom_call.1} parent=11 // pred_check
          %p147 = pneg %p64
        $region14: #{tpu_custom_call.1} parent=11 // pred_check_branch
          %149 = sbr.rel (%p147) target = $region16
        $region15: #{tpu_custom_call.1} parent=11 // pred_region
          %s151 = ssub.s32 6144, 6144
          %152 = vsyncadd [#allocation6], %s151
          %s153 = sshll.u32 [#allocation5], 4
          %s154 = int_to_ptr.vmem [resolvable:$true] %s153
          %159 = dma.hbm_to_vmem [thread:$0]  %s1, 6144, %s154, [#allocation6], 384, 384, 24
        $region16: #{tpu_custom_call.1} parent=11 // pred_fallthru
          _
        // Predicated region
        $region17: #{tpu_custom_call.1} parent=11 // pred_check
          %p160 = pneg %p85
        $region18: #{tpu_custom_call.1} parent=11 // pred_check_branch
          %162 = sbr.rel (%p160) target = $region20
        $region19: #{tpu_custom_call.1} parent=11 // pred_region
          _
        $region20: #{tpu_custom_call.1} parent=11 // pred_fallthru
          _
        // Predicated region
        $region21: #{tpu_custom_call.1} parent=11 // pred_check
          %p163 = pneg %p106
        $region22: #{tpu_custom_call.1} parent=11 // pred_check_branch
          %165 = sbr.rel (%p163) target = $region24
        $region23: #{tpu_custom_call.1} parent=11 // pred_region
          %s167 = ssub.s32 2048, 2048
          %168 = vsyncadd [#allocation6], %s167
          %s169 = sshll.u32 [#allocation7], 4
          %s170 = int_to_ptr.vmem [resolvable:$true] %s169
          %175 = dma.hbm_to_vmem [thread:$0]  %s3, 2048, %s170, [#allocation6], 128, 128, 8
        $region24: #{tpu_custom_call.1} parent=11 // pred_fallthru
          _
      $region12: #{tpu_custom_call.1} parent=5 // pred_fallthru
        _
      %p176 = scmp.lt.s32.totalorder %s17, 4
      // Predicated region
      $region25: #{tpu_custom_call.1} parent=5 // pred_check
        %p177 = pneg %p176
      $region26: #{tpu_custom_call.1} parent=5 // pred_check_branch
        %179 = sbr.rel (%p177) target = $region28
      $region27: #{tpu_custom_call.1} parent=5 // pred_region
        // Predicated region
        $region29: #{tpu_custom_call.1} parent=27 // pred_check
          %p180 = pneg %p37
        $region30: #{tpu_custom_call.1} parent=27 // pred_check_branch
          %182 = sbr.rel (%p180) target = $region32
        $region31: #{tpu_custom_call.1} parent=27 // pred_region
          %s183 = sand.u32 %s27, 1
          %s184 = scalar_lea.sflag [#allocation3], %s183
          %s185 = sand.u32 %s27, 1
          %s186 = scalar_lea.vmem [#allocation2], %s185
          %s188 = ssub.s32 16, 16
          %189 = vsyncadd %s184, %s188
          %s190 = smul.addr %s17, 16
          %s191 = scalar_lea.hbm %s0, %s190
          %s193 = sshll.u32 %s186, 4
          %s194 = int_to_ptr.vmem [resolvable:$true] %s193
          %196 = dma.hbm_to_vmem [thread:$0]  %s191, 16, %s194, %s184
        $region32: #{tpu_custom_call.1} parent=27 // pred_fallthru
          _
      $region28: #{tpu_custom_call.1} parent=5 // pred_fallthru
        _
      %p197 = scmp.le.s32.totalorder 1, %s17
      %p198 = scmp.lt.s32.totalorder %s17, 5
      %p199 = pnand %p197, %p198
      %p200 = pneg %p199
      // Predicated region
      $region33: #{tpu_custom_call.1} parent=5 // pred_check
        _
      $region34: #{tpu_custom_call.1} parent=5 // pred_check_branch
        %202 = sbr.rel (%p199) target = $region36
      $region35: #{tpu_custom_call.1} parent=5 // pred_region
        %s203 = ssub.s32 %s17, 1
        %s204 = sand.u32 %s30, 1
        %s205 = scalar_lea.sflag [#allocation3], %s204
        %s206 = sand.u32 %s30, 1
        %s207 = scalar_lea.vmem [#allocation2], %s206
        // Predicated region
        $region37: #{tpu_custom_call.1} parent=35 // pred_check
          %p208 = pneg %p43
        $region38: #{tpu_custom_call.1} parent=35 // pred_check_branch
          %210 = sbr.rel (%p208) target = $region40
        $region39: #{tpu_custom_call.1} parent=35 // pred_region
          %211 = dma.done %s205, 16
        $region40: #{tpu_custom_call.1} parent=35 // pred_fallthru
          _
        // Predicated region
        $region41: #{tpu_custom_call.1} parent=35 // pred_check
          %p212 = pneg %p64
        $region42: #{tpu_custom_call.1} parent=35 // pred_check_branch
          %214 = sbr.rel (%p212) target = $region44
        $region43: #{tpu_custom_call.1} parent=35 // pred_region
          %215 = dma.done [#allocation6], 6144
        $region44: #{tpu_custom_call.1} parent=35 // pred_fallthru
          _
        // Predicated region
        $region45: #{tpu_custom_call.1} parent=35 // pred_check
          %p216 = pneg %p106
        $region46: #{tpu_custom_call.1} parent=35 // pred_check_branch
          %218 = sbr.rel (%p216) target = $region48
        $region47: #{tpu_custom_call.1} parent=35 // pred_region
          %219 = dma.done [#allocation6], 2048
        $region48: #{tpu_custom_call.1} parent=35 // pred_fallthru
          _
        %s220 = sand.u32 %s30, 1
        %s221 = scalar_lea.sflag [#allocation3], %s220
        %s222 = sand.u32 %s30, 1
        %s223 = scalar_lea.vmem [#allocation2], %s222
        %p224 = pneg %p43
        %p225 = pneg %p40
        %p226 = pneg %p64
        %p227 = pneg %p61
        %p228 = pneg %p85
        %p229 = pneg %p82
        %p230 = pneg %p106
        %p231 = pneg %p103
        %p232 = pneg %p132
        %p233 = pneg %p129
        %s234 = sand.u32 %s119, 1
        %s235 = scalar_lea.sflag [#allocation4], %s234
        %s236 = sand.u32 %s119, 1
        %s237 = scalar_lea.vmem [#allocation8], %s236
        %v238 = vld [vmem:[%s207] sm:$0x1]
        %v239 = vld [vmem:[#allocation5] sm:$0xff]
        %v240 = vld [vmem:[#allocation5 + $0x8] sm:$0xff]
        %v241 = vld [vmem:[#allocation5 + $0x10] sm:$0xff]
        %v242 = vld [vmem:[#allocation5 + $0x18] sm:$0xff]
        %v243 = vld [vmem:[#allocation5 + $0x20] sm:$0xff]
        %v244 = vld [vmem:[#allocation5 + $0x28] sm:$0xff]
        %v245 = vld [vmem:[#allocation5 + $0x30] sm:$0xff]
        %v246 = vld [vmem:[#allocation5 + $0x38] sm:$0xff]
        %v247 = vld [vmem:[#allocation5 + $0x40] sm:$0xff]
        %v248 = vld [vmem:[#allocation5 + $0x48] sm:$0xff]
        %v249 = vld [vmem:[#allocation5 + $0x50] sm:$0xff]
        %v250 = vld [vmem:[#allocation5 + $0x58] sm:$0xff]
        %v251 = vld [vmem:[#allocation5 + $0x60] sm:$0xff]
        %v252 = vld [vmem:[#allocation5 + $0x68] sm:$0xff]
        %v253 = vld [vmem:[#allocation5 + $0x70] sm:$0xff]
        %v254 = vld [vmem:[#allocation5 + $0x78] sm:$0xff]
        %v255 = vld [vmem:[#allocation5 + $0x80] sm:$0xff]
        %v256 = vld [vmem:[#allocation5 + $0x88] sm:$0xff]
        %v257 = vld [vmem:[#allocation5 + $0x90] sm:$0xff]
        %v258 = vld [vmem:[#allocation5 + $0x98] sm:$0xff]
        %v259 = vld [vmem:[#allocation5 + $0xa0] sm:$0xff]
        %v260 = vld [vmem:[#allocation5 + $0xa8] sm:$0xff]
        %v261 = vld [vmem:[#allocation5 + $0xb0] sm:$0xff]
        %v262 = vld [vmem:[#allocation5 + $0xb8] sm:$0xff]
        %v263 = vld [vmem:[#allocation5 + $0xc0] sm:$0xff]
        %v264 = vld [vmem:[#allocation5 + $0xc8] sm:$0xff]
        %v265 = vld [vmem:[#allocation5 + $0xd0] sm:$0xff]
        %v266 = vld [vmem:[#allocation5 + $0xd8] sm:$0xff]
        %v267 = vld [vmem:[#allocation5 + $0xe0] sm:$0xff]
        %v268 = vld [vmem:[#allocation5 + $0xe8] sm:$0xff]
        %v269 = vld [vmem:[#allocation5 + $0xf0] sm:$0xff]
        %v270 = vld [vmem:[#allocation5 + $0xf8] sm:$0xff]
        %v271 = vld [vmem:[#allocation5 + $0x100] sm:$0xff]
        %v272 = vld [vmem:[#allocation5 + $0x108] sm:$0xff]
        %v273 = vld [vmem:[#allocation5 + $0x110] sm:$0xff]
        %v274 = vld [vmem:[#allocation5 + $0x118] sm:$0xff]
        %v275 = vld [vmem:[#allocation5 + $0x120] sm:$0xff]
        %v276 = vld [vmem:[#allocation5 + $0x128] sm:$0xff]
        %v277 = vld [vmem:[#allocation5 + $0x130] sm:$0xff]
        %v278 = vld [vmem:[#allocation5 + $0x138] sm:$0xff]
        %v279 = vld [vmem:[#allocation5 + $0x140] sm:$0xff]
        %v280 = vld [vmem:[#allocation5 + $0x148] sm:$0xff]
        %v281 = vld [vmem:[#allocation5 + $0x150] sm:$0xff]
        %v282 = vld [vmem:[#allocation5 + $0x158] sm:$0xff]
        %v283 = vld [vmem:[#allocation5 + $0x160] sm:$0xff]
        %v284 = vld [vmem:[#allocation5 + $0x168] sm:$0xff]
        %v285 = vld [vmem:[#allocation5 + $0x170] sm:$0xff]
        %v286 = vld [vmem:[#allocation5 + $0x178] sm:$0xff]
        %v287 = vld [vmem:[%s2] sm:$0x7]
        %v289 = vlaneseq
        %v290 = vshrl.u32 %v289, 7
        %v291 = vsub.s32 0, %v290
        %v292 = vrot.slane %v287, %v291
        %v293 = vlaneseq
        %v294 = vshrl.u32 %v293, 7
        %v295 = vsub.s32 1, %v294
        %v296 = vrot.slane %v287, %v295
        %v297 = vlaneseq
        %v298 = vshrl.u32 %v297, 7
        %v299 = vsub.s32 2, %v298
        %v300 = vrot.slane %v287, %v299
        %304 = vmatprep.subr.mxu0 %v285
        %305 = vmatpush1.msra.mxu0 %v284
        %306 = vmatprep.subr.mxu0 %v282
        %307 = vmatpush1.msra.mxu0 %v281
        %308 = vmatprep.subr.mxu0 %v279
        %309 = vmatpush1.msra.mxu0 %v278
        %310 = vmatprep.subr.mxu0 %v276
        %311 = vmatpush1.msra.mxu0 %v275
        %312 = vmatprep.subr.mxu0 %v273
        %313 = vmatpush1.msra.mxu0 %v272
        %314 = vmatprep.subr.mxu0 %v270
        %315 = vmatpush1.msra.mxu0 %v269
        %316 = vmatprep.subr.mxu0 %v267
        %317 = vmatpush1.msra.mxu0 %v266
        %318 = vmatprep.subr.mxu0 %v264
        %319 = vmatpush1.msra.mxu0 %v263
        %320 = vmatprep.subr.mxu0 %v261
        %321 = vmatpush1.msra.mxu0 %v260
        %322 = vmatprep.subr.mxu0 %v258
        %323 = vmatpush1.msra.mxu0 %v257
        %324 = vmatprep.subr.mxu0 %v255
        %325 = vmatpush1.msra.mxu0 %v254
        %326 = vmatprep.subr.mxu0 %v252
        %327 = vmatpush1.msra.mxu0 %v251
        %328 = vmatprep.subr.mxu0 %v249
        %329 = vmatpush1.msra.mxu0 %v248
        %330 = vmatprep.subr.mxu0 %v246
        %331 = vmatpush1.msra.mxu0 %v245
        %332 = vmatprep.subr.mxu0 %v243
        %333 = vmatpush1.msra.mxu0 %v242
        %334 = vmatprep.subr.mxu0 %v240
        %335 = vmatpush1.msra.mxu0 %v239
        %336 = vmatprep.subr.mxu0 0.0
        %337 = vmatpush2.msra.mxu0 0.0
        %338 = vmatprep.subr.mxu0 0.0
        %339 = vmatpush2.msra.mxu0 0.0
        %340 = vmatprep.subr.mxu0 0.0
        %341 = vmatpush2.msra.mxu0 0.0
        %342 = vmatprep.subr.mxu0 0.0
        %343 = vmatpush2.msra.mxu0 0.0
        %344 = vmatprep.subr.mxu0 0.0
        %345 = vmatpush2.msra.mxu0 0.0
        %346 = vmatprep.subr.mxu0 0.0
        %347 = vmatpush2.msra.mxu0 0.0
        %348 = vmatprep.subr.mxu0 0.0
        %349 = vmatpush2.msra.mxu0 0.0
        %350 = vmatprep.subr.mxu0 0.0
        %351 = vmatpush2.msra.mxu0 0.0
        %352 = vmatprep.subr.mxu0 0.0
        %353 = vmatpush2.msra.mxu0 0.0
        %354 = vmatprep.subr.mxu0 0.0
        %355 = vmatpush2.msra.mxu0 0.0
        %356 = vmatprep.subr.mxu0 0.0
        %357 = vmatpush2.msra.mxu0 0.0
        %358 = vmatprep.subr.mxu0 0.0
        %359 = vmatpush2.msra.mxu0 0.0
        %360 = vmatprep.subr.mxu0 0.0
        %361 = vmatpush2.msra.mxu0 0.0
        %362 = vmatprep.subr.mxu0 0.0
        %363 = vmatpush2.msra.mxu0 0.0
        %364 = vmatprep.subr.mxu0 0.0
        %365 = vmatpush2.msra.mxu0 0.0
        %366 = vmatprep.subr.mxu0 0.0
        %367 = vmatpush2.msra.mxu0 0.0
        %368 = vmatprep.mubr.f32.mxu0 0.0
        %369 = vmatmul.mubr.f32.gmra.mxu0 %v238
        %v370 = vpop.f32.mrf.mxu0
        %v371 = vadd.f32 %v292, %v370
        %v372 = vpop.f32.mrf.mxu0
        %v373 = vadd.f32 %v296, %v372
        %374 = vdwg.mxu0
        %375 = vmatprep.subr.mxu0 0.0
        %376 = vmatpush1.msra.mxu0 %v286
        %377 = vmatprep.subr.mxu0 0.0
        %378 = vmatpush1.msra.mxu0 %v283
        %379 = vmatprep.subr.mxu0 0.0
        %380 = vmatpush1.msra.mxu0 %v280
        %381 = vmatprep.subr.mxu0 0.0
        %382 = vmatpush1.msra.mxu0 %v277
        %383 = vmatprep.subr.mxu0 0.0
        %384 = vmatpush1.msra.mxu0 %v274
        %385 = vmatprep.subr.mxu0 0.0
        %386 = vmatpush1.msra.mxu0 %v271
        %387 = vmatprep.subr.mxu0 0.0
        %388 = vmatpush1.msra.mxu0 %v268
        %389 = vmatprep.subr.mxu0 0.0
        %390 = vmatpush1.msra.mxu0 %v265
        %391 = vmatprep.subr.mxu0 0.0
        %392 = vmatpush1.msra.mxu0 %v262
        %393 = vmatprep.subr.mxu0 0.0
        %394 = vmatpush1.msra.mxu0 %v259
        %395 = vmatprep.subr.mxu0 0.0
        %396 = vmatpush1.msra.mxu0 %v256
        %397 = vmatprep.subr.mxu0 0.0
        %398 = vmatpush1.msra.mxu0 %v253
        %399 = vmatprep.subr.mxu0 0.0
        %400 = vmatpush1.msra.mxu0 %v250
        %401 = vmatprep.subr.mxu0 0.0
        %402 = vmatpush1.msra.mxu0 %v247
        %403 = vmatprep.subr.mxu0 0.0
        %404 = vmatpush1.msra.mxu0 %v244
        %405 = vmatprep.subr.mxu0 0.0
        %406 = vmatpush1.msra.mxu0 %v241
        %407 = vmatprep.subr.mxu0 0.0
        %408 = vmatpush2.msra.mxu0 0.0
        %409 = vmatprep.subr.mxu0 0.0
        %410 = vmatpush2.msra.mxu0 0.0
        %411 = vmatprep.subr.mxu0 0.0
        %412 = vmatpush2.msra.mxu0 0.0
        %413 = vmatprep.subr.mxu0 0.0
        %414 = vmatpush2.msra.mxu0 0.0
        %415 = vmatprep.subr.mxu0 0.0
        %416 = vmatpush2.msra.mxu0 0.0
        %417 = vmatprep.subr.mxu0 0.0
        %418 = vmatpush2.msra.mxu0 0.0
        %419 = vmatprep.subr.mxu0 0.0
        %420 = vmatpush2.msra.mxu0 0.0
        %421 = vmatprep.subr.mxu0 0.0
        %422 = vmatpush2.msra.mxu0 0.0
        %423 = vmatprep.subr.mxu0 0.0
        %424 = vmatpush2.msra.mxu0 0.0
        %425 = vmatprep.subr.mxu0 0.0
        %426 = vmatpush2.msra.mxu0 0.0
        %427 = vmatprep.subr.mxu0 0.0
        %428 = vmatpush2.msra.mxu0 0.0
        %429 = vmatprep.subr.mxu0 0.0
        %430 = vmatpush2.msra.mxu0 0.0
        %431 = vmatprep.subr.mxu0 0.0
        %432 = vmatpush2.msra.mxu0 0.0
        %433 = vmatprep.subr.mxu0 0.0
        %434 = vmatpush2.msra.mxu0 0.0
        %435 = vmatprep.subr.mxu0 0.0
        %436 = vmatpush2.msra.mxu0 0.0
        %437 = vmatprep.subr.mxu0 0.0
        %438 = vmatpush2.msra.mxu0 0.0
        %439 = vmatprep.mubr.f32.mxu0 0.0
        %440 = vmatmul.mubr.f32.gmra.mxu0 %v238
        %v441 = vpop.f32.mrf.mxu0
        %v442 = vadd.f32 %v300, %v441
        %v443 = vpop.f32.mrf.mxu0
        %444 = vdwg.mxu0
        %v445 = vlaneseq
        %v446 = vshrl.u32 %v445, 7
        %v447 = vsub.s32 0, %v446
        %v448 = vrot.slane %v373, %v447
        %450 = vbcast.lane.b32.xlu0 %v448, 256
        %v451 = vpop.permute.xlu0 %450
        %s453 = sor.u32 256, 8
        %454 = vbcast.lane.b32.xlu0 %v448, %s453
        %v455 = vpop.permute.xlu0 %454
        %s457 = sor.u32 256, 16
        %458 = vbcast.lane.b32.xlu0 %v448, %s457
        %v459 = vpop.permute.xlu0 %458
        %s461 = sor.u32 256, 24
        %462 = vbcast.lane.b32.xlu0 %v448, %s461
        %v463 = vpop.permute.xlu0 %462
        %s465 = sor.u32 256, 32
        %466 = vbcast.lane.b32.xlu0 %v448, %s465
        %v467 = vpop.permute.xlu0 %466
        %s469 = sor.u32 256, 40
        %470 = vbcast.lane.b32.xlu0 %v448, %s469
        %v471 = vpop.permute.xlu0 %470
        %s473 = sor.u32 256, 48
        %474 = vbcast.lane.b32.xlu0 %v448, %s473
        %v475 = vpop.permute.xlu0 %474
        %s477 = sor.u32 256, 56
        %478 = vbcast.lane.b32.xlu0 %v448, %s477
        %v479 = vpop.permute.xlu0 %478
        %s481 = sor.u32 256, 64
        %482 = vbcast.lane.b32.xlu0 %v448, %s481
        %v483 = vpop.permute.xlu0 %482
        %s485 = sor.u32 256, 72
        %486 = vbcast.lane.b32.xlu0 %v448, %s485
        %v487 = vpop.permute.xlu0 %486
        %s489 = sor.u32 256, 80
        %490 = vbcast.lane.b32.xlu0 %v448, %s489
        %v491 = vpop.permute.xlu0 %490
        %s493 = sor.u32 256, 88
        %494 = vbcast.lane.b32.xlu0 %v448, %s493
        %v495 = vpop.permute.xlu0 %494
        %s497 = sor.u32 256, 96
        %498 = vbcast.lane.b32.xlu0 %v448, %s497
        %v499 = vpop.permute.xlu0 %498
        %s501 = sor.u32 256, 104
        %502 = vbcast.lane.b32.xlu0 %v448, %s501
        %v503 = vpop.permute.xlu0 %502
        %s505 = sor.u32 256, 112
        %506 = vbcast.lane.b32.xlu0 %v448, %s505
        %v507 = vpop.permute.xlu0 %506
        %s509 = sor.u32 256, 120
        %510 = vbcast.lane.b32.xlu0 %v448, %s509
        %v511 = vpop.permute.xlu0 %510
        %v512 = vlaneseq
        %v513 = vshrl.u32 %v512, 7
        %v514 = vsub.s32 0, %v513
        %v515 = vrot.slane %v371, %v514
        %v516 = vmul.f32 %v451, %v515
        %v517 = vmul.f32 %v455, %v515
        %v518 = vmul.f32 %v459, %v515
        %v519 = vmul.f32 %v463, %v515
        %v520 = vmul.f32 %v467, %v515
        %v521 = vmul.f32 %v471, %v515
        %v522 = vmul.f32 %v475, %v515
        %v523 = vmul.f32 %v479, %v515
        %v524 = vmul.f32 %v483, %v515
        %v525 = vmul.f32 %v487, %v515
        %v526 = vmul.f32 %v491, %v515
        %v527 = vmul.f32 %v495, %v515
        %v528 = vmul.f32 %v499, %v515
        %v529 = vmul.f32 %v503, %v515
        %v530 = vmul.f32 %v507, %v515
        %v531 = vmul.f32 %v511, %v515
        %v532 = vld [vmem:[#allocation7] sm:$0xff]
        %v533 = vld [vmem:[#allocation7 + $0x8] sm:$0xff]
        %v534 = vld [vmem:[#allocation7 + $0x10] sm:$0xff]
        %v535 = vld [vmem:[#allocation7 + $0x18] sm:$0xff]
        %v536 = vld [vmem:[#allocation7 + $0x20] sm:$0xff]
        %v537 = vld [vmem:[#allocation7 + $0x28] sm:$0xff]
        %v538 = vld [vmem:[#allocation7 + $0x30] sm:$0xff]
        %v539 = vld [vmem:[#allocation7 + $0x38] sm:$0xff]
        %v540 = vld [vmem:[#allocation7 + $0x40] sm:$0xff]
        %v541 = vld [vmem:[#allocation7 + $0x48] sm:$0xff]
        %v542 = vld [vmem:[#allocation7 + $0x50] sm:$0xff]
        %v543 = vld [vmem:[#allocation7 + $0x58] sm:$0xff]
        %v544 = vld [vmem:[#allocation7 + $0x60] sm:$0xff]
        %v545 = vld [vmem:[#allocation7 + $0x68] sm:$0xff]
        %v546 = vld [vmem:[#allocation7 + $0x70] sm:$0xff]
        %v547 = vld [vmem:[#allocation7 + $0x78] sm:$0xff]
        %vm548 = vcmp.ne.f32.partialorder %v532, 0.0
        %vm549 = vcmp.ne.f32.partialorder %v533, 0.0
        %vm550 = vcmp.ne.f32.partialorder %v534, 0.0
        %vm551 = vcmp.ne.f32.partialorder %v535, 0.0
        %vm552 = vcmp.ne.f32.partialorder %v536, 0.0
        %vm553 = vcmp.ne.f32.partialorder %v537, 0.0
        %vm554 = vcmp.ne.f32.partialorder %v538, 0.0
        %vm555 = vcmp.ne.f32.partialorder %v539, 0.0
        %vm556 = vcmp.ne.f32.partialorder %v540, 0.0
        %vm557 = vcmp.ne.f32.partialorder %v541, 0.0
        %vm558 = vcmp.ne.f32.partialorder %v542, 0.0
        %vm559 = vcmp.ne.f32.partialorder %v543, 0.0
        %vm560 = vcmp.ne.f32.partialorder %v544, 0.0
        %vm561 = vcmp.ne.f32.partialorder %v545, 0.0
        %vm562 = vcmp.ne.f32.partialorder %v546, 0.0
        %vm563 = vcmp.ne.f32.partialorder %v547, 0.0
        %v564 = vsel %vm548, %v516, -1e+09
        %v565 = vsel %vm549, %v517, -1e+09
        %v566 = vsel %vm550, %v518, -1e+09
        %v567 = vsel %vm551, %v519, -1e+09
        %v568 = vsel %vm552, %v520, -1e+09
        %v569 = vsel %vm553, %v521, -1e+09
        %v570 = vsel %vm554, %v522, -1e+09
        %v571 = vsel %vm555, %v523, -1e+09
        %v572 = vsel %vm556, %v524, -1e+09
        %v573 = vsel %vm557, %v525, -1e+09
        %v574 = vsel %vm558, %v526, -1e+09
        %v575 = vsel %vm559, %v527, -1e+09
        %v576 = vsel %vm560, %v528, -1e+09
        %v577 = vsel %vm561, %v529, -1e+09
        %v578 = vsel %vm562, %v530, -1e+09
        %v579 = vsel %vm563, %v531, -1e+09
        %v580 = vmax.f32 %v564, %v568
        %v581 = vmax.f32 %v565, %v569
        %v582 = vmax.f32 %v566, %v570
        %v583 = vmax.f32 %v567, %v571
        %v584 = vmax.f32 %v580, %v572
        %v585 = vmax.f32 %v581, %v573
        %v586 = vmax.f32 %v582, %v574
        %v587 = vmax.f32 %v583, %v575
        %v588 = vmax.f32 %v584, %v576
        %v589 = vmax.f32 %v585, %v577
        %v590 = vmax.f32 %v586, %v578
        %v591 = vmax.f32 %v587, %v579
        %v592 = vmax.f32 %v588, %v589
        %v593 = vmax.f32 %v590, %v591
        %v594 = vmax.f32 %v592, %v593
        %v595 = vrot.slane %v594, 4
        %v596 = vmax.f32 %v594, %v595
        %v597 = vrot.slane %v596, 2
        %v598 = vmax.f32 %v596, %v597
        %v599 = vrot.slane %v598, 1
        %v600 = vmax.f32 %v598, %v599
        %v601 = vsub.f32 %v564, %v600
        %v602 = vsub.f32 %v565, %v600
        %v603 = vsub.f32 %v566, %v600
        %v604 = vsub.f32 %v567, %v600
        %v605 = vsub.f32 %v568, %v600
        %v606 = vsub.f32 %v569, %v600
        %v607 = vsub.f32 %v570, %v600
        %v608 = vsub.f32 %v571, %v600
        %v609 = vsub.f32 %v572, %v600
        %v610 = vsub.f32 %v573, %v600
        %v611 = vsub.f32 %v574, %v600
        %v612 = vsub.f32 %v575, %v600
        %v613 = vsub.f32 %v576, %v600
        %v614 = vsub.f32 %v577, %v600
        %v615 = vsub.f32 %v578, %v600
        %v616 = vsub.f32 %v579, %v600
        %v617 = vmul.f32 %v601, 1.442695
        %v618 = vpow.pop %v617
        %v619 = vmul.f32 %v602, 1.442695
        %v620 = vpow.pop %v619
        %v621 = vmul.f32 %v603, 1.442695
        %v622 = vpow.pop %v621
        %v623 = vmul.f32 %v604, 1.442695
        %v624 = vpow.pop %v623
        %v625 = vmul.f32 %v605, 1.442695
        %v626 = vpow.pop %v625
        %v627 = vmul.f32 %v606, 1.442695
        %v628 = vpow.pop %v627
        %v629 = vmul.f32 %v607, 1.442695
        %v630 = vpow.pop %v629
        %v631 = vmul.f32 %v608, 1.442695
        %v632 = vpow.pop %v631
        %v633 = vmul.f32 %v609, 1.442695
        %v634 = vpow.pop %v633
        %v635 = vmul.f32 %v610, 1.442695
        %v636 = vpow.pop %v635
        %v637 = vmul.f32 %v611, 1.442695
        %v638 = vpow.pop %v637
        %v639 = vmul.f32 %v612, 1.442695
        %v640 = vpow.pop %v639
        %v641 = vmul.f32 %v613, 1.442695
        %v642 = vpow.pop %v641
        %v643 = vmul.f32 %v614, 1.442695
        %v644 = vpow.pop %v643
        %v645 = vmul.f32 %v615, 1.442695
        %v646 = vpow.pop %v645
        %v647 = vmul.f32 %v616, 1.442695
        %v648 = vpow.pop %v647
        %v649 = vadd.f32 %v618, %v620
        %v650 = vadd.f32 %v649, %v622
        %v651 = vadd.f32 %v650, %v624
        %v652 = vadd.f32 %v651, %v626
        %v653 = vadd.f32 %v652, %v628
        %v654 = vadd.f32 %v653, %v630
        %v655 = vadd.f32 %v654, %v632
        %v656 = vadd.f32 %v655, %v634
        %v657 = vadd.f32 %v656, %v636
        %v658 = vadd.f32 %v657, %v638
        %v659 = vadd.f32 %v658, %v640
        %v660 = vadd.f32 %v659, %v642
        %v661 = vadd.f32 %v660, %v644
        %v662 = vadd.f32 %v661, %v646
        %v663 = vadd.f32 %v662, %v648
        %v664 = vrot.slane %v663, 4
        %v665 = vadd.f32 %v663, %v664
        %v666 = vrot.slane %v665, 2
        %v667 = vadd.f32 %v665, %v666
        %v668 = vrot.slane %v667, 1
        %v669 = vadd.f32 %v667, %v668
        %670 = vmatprep.subr.mxu0 0.0
        %671 = vmatpush1.msra.mxu0 %v648
        %672 = vmatprep.subr.mxu0 0.0
        %673 = vmatpush1.msra.mxu0 %v646
        %674 = vmatprep.subr.mxu0 0.0
        %675 = vmatpush1.msra.mxu0 %v644
        %676 = vmatprep.subr.mxu0 0.0
        %677 = vmatpush1.msra.mxu0 %v642
        %678 = vmatprep.subr.mxu0 0.0
        %679 = vmatpush1.msra.mxu0 %v640
        %680 = vmatprep.subr.mxu0 0.0
        %681 = vmatpush1.msra.mxu0 %v638
        %682 = vmatprep.subr.mxu0 0.0
        %683 = vmatpush1.msra.mxu0 %v636
        %684 = vmatprep.subr.mxu0 0.0
        %685 = vmatpush1.msra.mxu0 %v634
        %686 = vmatprep.subr.mxu0 0.0
        %687 = vmatpush1.msra.mxu0 %v632
        %688 = vmatprep.subr.mxu0 0.0
        %689 = vmatpush1.msra.mxu0 %v630
        %690 = vmatprep.subr.mxu0 0.0
        %691 = vmatpush1.msra.mxu0 %v628
        %692 = vmatprep.subr.mxu0 0.0
        %693 = vmatpush1.msra.mxu0 %v626
        %694 = vmatprep.subr.mxu0 0.0
        %695 = vmatpush1.msra.mxu0 %v624
        %696 = vmatprep.subr.mxu0 0.0
        %697 = vmatpush1.msra.mxu0 %v622
        %698 = vmatprep.subr.mxu0 0.0
        %699 = vmatpush1.msra.mxu0 %v620
        %700 = vmatprep.subr.mxu0 0.0
        %701 = vmatpush1.msra.mxu0 %v618
        %702 = vmatprep.subr.mxu0 0.0
        %703 = vmatpush2.msra.mxu0 0.0
        %704 = vmatprep.subr.mxu0 0.0
        %705 = vmatpush2.msra.mxu0 0.0
        %706 = vmatprep.subr.mxu0 0.0
        %707 = vmatpush2.msra.mxu0 0.0
        %708 = vmatprep.subr.mxu0 0.0
        %709 = vmatpush2.msra.mxu0 0.0
        %710 = vmatprep.subr.mxu0 0.0
        %711 = vmatpush2.msra.mxu0 0.0
        %712 = vmatprep.subr.mxu0 0.0
        %713 = vmatpush2.msra.mxu0 0.0
        %714 = vmatprep.subr.mxu0 0.0
        %715 = vmatpush2.msra.mxu0 0.0
        %716 = vmatprep.subr.mxu0 0.0
        %717 = vmatpush2.msra.mxu0 0.0
        %718 = vmatprep.subr.mxu0 0.0
        %719 = vmatpush2.msra.mxu0 0.0
        %720 = vmatprep.subr.mxu0 0.0
        %721 = vmatpush2.msra.mxu0 0.0
        %722 = vmatprep.subr.mxu0 0.0
        %723 = vmatpush2.msra.mxu0 0.0
        %724 = vmatprep.subr.mxu0 0.0
        %725 = vmatpush2.msra.mxu0 0.0
        %726 = vmatprep.subr.mxu0 0.0
        %727 = vmatpush2.msra.mxu0 0.0
        %728 = vmatprep.subr.mxu0 0.0
        %729 = vmatpush2.msra.mxu0 0.0
        %730 = vmatprep.subr.mxu0 0.0
        %731 = vmatpush2.msra.mxu0 0.0
        %732 = vmatprep.subr.mxu0 0.0
        %733 = vmatpush2.msra.mxu0 0.0
        %734 = vmatprep.mubr.f32.mxu0 0.0
        %735 = vmatmul.mubr.f32.gmra.mxu0 %v442
        %v736 = vpop.f32.mrf.mxu0
        %v737 = vadd.f32 0.0, %v736
        %v738 = vpop.f32.mrf.mxu0
        %739 = vdwg.mxu0
        %v740 = vrcp.pop %v669
        %v741 = vmul.f32 %v737, %v740
        %742 = vst [vmem:[%s237] sm:$0x1] %v741
        %s743 = sand.u32 %s119, 1
        %s744 = scalar_lea.sflag [#allocation4], %s743
        %s745 = sand.u32 %s119, 1
        %s746 = scalar_lea.vmem [#allocation8], %s745
        // Predicated region
        $region49: #{tpu_custom_call.1} parent=35 // pred_check
          %p747 = pneg %p129
        $region50: #{tpu_custom_call.1} parent=35 // pred_check_branch
          %749 = sbr.rel (%p747) target = $region52
        $region51: #{tpu_custom_call.1} parent=35 // pred_region
          %s751 = ssub.s32 16, 16
          %752 = vsyncadd %s744, %s751
          %s753 = smul.addr %s22, 16
          %s754 = scalar_lea.hbm %s4, %s753
          %s756 = sshll.u32 %s746, 4
          %s757 = int_to_ptr.vmem [resolvable:$true] %s756
          %759 = dma.vmem_to_hbm [thread:$0]  %s757, 16, %s754, %s744
        $region52: #{tpu_custom_call.1} parent=35 // pred_fallthru
          _
      $region36: #{tpu_custom_call.1} parent=5 // pred_fallthru
        _
      %p760 = scmp.le.s32.totalorder 2, %s17
      // Predicated region
      $region53: #{tpu_custom_call.1} parent=5 // pred_check
        %p761 = pneg %p760
      $region54: #{tpu_custom_call.1} parent=5 // pred_check_branch
        %763 = sbr.rel (%p761) target = $region56
      $region55: #{tpu_custom_call.1} parent=5 // pred_region
        %s764 = ssub.s32 %s17, 2
        // Predicated region
        $region57: #{tpu_custom_call.1} parent=55 // pred_check
          %p765 = pneg %p135
        $region58: #{tpu_custom_call.1} parent=55 // pred_check_branch
          %767 = sbr.rel (%p765) target = $region60
        $region59: #{tpu_custom_call.1} parent=55 // pred_region
          %s768 = sand.u32 %s120, 1
          %s769 = scalar_lea.sflag [#allocation4], %s768
          %s770 = sand.u32 %s120, 1
          %s771 = scalar_lea.vmem [#allocation8], %s770
          %772 = dma.done %s769, 16
        $region60: #{tpu_custom_call.1} parent=55 // pred_fallthru
          _
      $region56: #{tpu_custom_call.1} parent=5 // pred_fallthru
        _
    $region6: #{tpu_custom_call.1} parent=1 // loop_footer
      %s21 = sadd.s32 1, %s17
    $region7: #{tpu_custom_call.1} parent=1 // loop_footer_branch
      %16 = sbr.rel target = $region3
    $region8: #{tpu_custom_call.1} parent=1 // loop_exit
      _
    %773 = vsyncpa [#allocation3], 1
    %s774 = scalar_lea.sflag [#allocation3], 1
    %775 = vsyncpa %s774, 1
    %776 = vsyncpa [#allocation6], 1
    %777 = vsyncpa [#allocation4], 1
    %s778 = scalar_lea.sflag [#allocation4], 1
    %779 = vsyncpa %s778, 1

</llo_original>
